<compile_context>
chip_gen: v5e
topology: v5e:2x2
jax: 0.10.0
libtpu: 0.0.40
codegen_flags: <defaults>
</compile_context>

<pallas_src>
import jax
import jax.numpy as jnp
from jax.experimental import pallas as pl
from jax.experimental.pallas import tpu as pltpu


def _tile_config(itemsize, lane_width):
    """Pick (block_rows, vmem_limit_bytes) per TPU generation.

    The kernel is pure HBM streaming; the only lever is tile size: big enough
    to amortize the ~0.35 us per-grid-step overhead, small enough that the
    double-buffered in+out footprint (~4x tile) fits scoped VMEM.
    """
    tile_bytes = 2 << 20        # conservative default (fits v5e 16 MiB scoped)
    vmem_limit = None
    try:
        cap = pltpu.get_tpu_info().vmem_capacity_bytes
        if cap <= (72 << 20):
            # v7x: 64 MiB physical VMEM, ~3.2 TB/s HBM -> 8 MiB tiles keep the
            # fixed per-step cost <7%; ~32 MiB pipelined footprint fits.
            tile_bytes = 8 << 20
            vmem_limit = 40 << 20
        else:
            # v5e / v6e: 128 MiB physical VMEM. 4 MiB tiles; raise the scoped
            # limit explicitly so the ~16 MiB footprint also fits v5e's
            # 16 MiB default scoped limit.
            tile_bytes = 4 << 20
            vmem_limit = 24 << 20
    except Exception:
        pass  # hardware query unavailable -> keep conservative defaults
    rows = max(8, (tile_bytes // (lane_width * itemsize)) // 8 * 8)
    return rows, vmem_limit


def make_lambda_layer(lambd, *, max_lane_width=1024, compute_dtype=None,
                      block_rows=None, vmem_limit_bytes=None):
    """Pallas equivalent of LambdaLayer(lambd) for elementwise lambdas.

    `lambd` must be a JAX-traceable elementwise function (output shape ==
    input shape).  It is applied in `compute_dtype` (default: the input
    dtype, matching PyTorch's behavior) and cast back to the input dtype on
    store.
    """

    def apply(x):
        orig_shape = x.shape
        dtype = x.dtype
        total = x.size
        itemsize = jnp.dtype(dtype).itemsize
        cdt = dtype if compute_dtype is None else compute_dtype

        def kernel(x_ref, o_ref):
            # Hot path: (optional) cast, apply the user lambda, cast on store.
            o_ref[...] = lambd(x_ref[...].astype(cdt)).astype(o_ref.dtype)

        # ---- wrapper layout plumbing (zero-copy on the common path) ------
        # Largest lane width that is a multiple of 128, <= max_lane_width,
        # and divides the element count: the reshape is then free (no pad).
        L = 0
        cand = max(128, (max_lane_width // 128) * 128)
        while cand >= 128:
            if total % cand == 0:
                L = cand
                break
            cand -= 128

        if L > 0:
            x2 = x.reshape(total // L, L)
            needs_trim = False
        else:
            # Rare fallback: element count not a multiple of 128.  One pad
            # pass in, one trim pass out.  The padded tail is discarded by
            # the final slice, so lambd(pad) never leaks into the output.
            L = 128
            padded = pl.cdiv(total, L) * L
            x2 = jnp.pad(x.reshape(-1), (0, padded - total)).reshape(-1, L)
            needs_trim = True

        n_rows = x2.shape[0]
        br_cfg, vmem_limit = _tile_config(itemsize, L)
        if block_rows is not None:
            br_cfg = max(8, (block_rows // 8) * 8)
        if vmem_limit_bytes is not None:
            vmem_limit = vmem_limit_bytes

        if n_rows <= br_cfg:
            br = n_rows        # full-extent block: (8,128) rule satisfied
        else:
            br = br_cfg        # multiple of 8; ragged last block is handled
                               # by Pallas (masked writes), no row padding
        grid_rows = pl.cdiv(n_rows, br)

        out2 = pl.pallas_call(
            kernel,
            out_shape=jax.ShapeDtypeStruct(x2.shape, dtype),
            grid=(grid_rows,),
            in_specs=[pl.BlockSpec((br, L), lambda i: (i, 0))],
            out_specs=pl.BlockSpec((br, L), lambda i: (i, 0)),
            compiler_params=pltpu.CompilerParams(
                # TODO(synk): on v7x, consider pltpu.CORE_PARALLEL on this
                # axis (or a pl.core_map split) if a single TensorCore's DMA
                # cannot saturate 3.2 TB/s once compute co-binds.
                dimension_semantics=("parallel",),
                vmem_limit_bytes=vmem_limit,
            ),
        )(x2)

        if needs_trim:
            return out2.reshape(-1)[:total].reshape(orig_shape)
        return out2.reshape(orig_shape)

    return apply


if __name__ == "__main__":
    # Concrete deterministic lambda: SiLU (x * sigmoid(x)).  lax.logistic
    # takes the EUP path (cheaper than an explicit divide on v7x).
    lambd = lambda t: t * jax.lax.logistic(t)

    lambda_layer = make_lambda_layer(lambd)

    key = jax.random.PRNGKey(0)
    x = jax.random.normal(key, (2, 4, 16, 16), dtype=jnp.float32)  # NCHW

    out = jax.block_until_ready(lambda_layer(x))

    # Correctness check against the same lambda applied in plain JAX.
    ref = lambd(x)
    assert out.shape == ref.shape and out.dtype == ref.dtype
    assert jnp.allclose(out, ref, atol=1e-6, rtol=1e-6)

    print("KERNEL_OK")
</pallas_src>

<mosaic_0001>
module attributes {stable_mosaic.version = 11 : i64} {
  func.func @kernel(%arg0: i32, %arg1: memref<2x1024xf32, #tpu.memory_space<vmem>>, %arg2: memref<2x1024xf32, #tpu.memory_space<vmem>>) attributes {dimension_semantics = [#tpu.dimension_semantics<parallel>], iteration_bounds = array<i64: 1>, scalar_prefetch = 0 : i64, scratch_operands = 0 : i64, tpu.core_type = #tpu.core_type<tc>, window_params = [{transform_indices = @transform_0, window_bounds = array<i64: 2, 1024>}, {transform_indices = @transform_1, window_bounds = array<i64: 2, 1024>}]} {
    %c0 = arith.constant 0 : index
    %c0_0 = arith.constant 0 : index
    %0 = vector.load %arg1[%c0, %c0_0] : memref<2x1024xf32, #tpu.memory_space<vmem>>, vector<2x1024xf32>
    %1 = arith.negf %0 : vector<2x1024xf32>
    %2 = math.exp %1 : vector<2x1024xf32>
    %cst = arith.constant 1.000000e+00 : f32
    %3 = vector.broadcast %cst : f32 to vector<2x1024xf32>
    %4 = arith.addf %3, %2 : vector<2x1024xf32>
    %5 = arith.divf %3, %4 : vector<2x1024xf32>
    %6 = arith.mulf %0, %5 : vector<2x1024xf32>
    %c0_1 = arith.constant 0 : index
    %c0_2 = arith.constant 0 : index
    %7 = vector.load %arg2[%c0_1, %c0_2] : memref<2x1024xf32, #tpu.memory_space<vmem>>, vector<2x1024xf32>
    tpu.vector_store %arg2[%c0_1, %c0_2], %6 {strides = array<i32>} : memref<2x1024xf32, #tpu.memory_space<vmem>>, vector<2x1024xf32>,
    return
  }
  func.func @transform_0(%arg0: i32) -> (i32, i32) {
    %c0_i32 = arith.constant 0 : i32
    %c0_i32_0 = arith.constant 0 : i32
    return %arg0, %c0_i32 : i32, i32
  }
  func.func @transform_1(%arg0: i32) -> (i32, i32) {
    %c0_i32 = arith.constant 0 : i32
    %c0_i32_0 = arith.constant 0 : i32
    return %arg0, %c0_i32 : i32, i32
  }
}

</mosaic_0001>

<llo_original>
// kernel: tpu_custom_call.1
$region0: #{tpu_custom_call.1}
  #allocation0 [shape = 'u32[]', space=smem, size = 0x4, offset = 0x4, fixed_abs, tag = 'smem constant byte address 0x4 - core index']
  #allocation1 [shape = 'u32[72,128]{1,0:T(1,128)}', space=vmem, size = 0x9000, scoped, tag = 'internal scratch']
  %s0 = inlined_call_operand.hbm [shape: f32[2,1024], index: 0, kind: input, shape index: {}]
  %s1 = inlined_call_operand.hbm [shape: f32[2,1024], index: 1, kind: output, shape index: {}]
  %s2 = sld [smem:[#allocation0]]
  $region18: #{tpu_custom_call.1} parent=0
    _
  %s4 = ssub.s32 1, %s2
  %s5 = scalar_select 0, %s4, %s2
  $region1: #{tpu_custom_call.1} parent=0
    #allocation2 [shape = 'u8[8192]{0}', space=vmem, size = 0x2000, scoped, tag = 'input window, operand 0, single buffered']
    #allocation3 [shape = 's32[1]{0}', space=sflag, size = 0x4, scoped, tag = 'scoped memory for tpu_custom_call.1']
    #allocation4 [shape = 's32[1]{0}', space=sflag, size = 0x4, scoped, tag = 'scoped memory for tpu_custom_call.1']
    #allocation5 [shape = 'u8[8192]{0}', space=vmem, size = 0x2000, scoped, tag = 'output window, operand 0, single buffered']
    %6 = vsyncpa [#allocation3], 0
    %7 = vsyncpa [#allocation4], 0
    // Predicated region
    $region2: #{tpu_custom_call.1} parent=1 // pred_check
      _
    $region3: #{tpu_custom_call.1} parent=1 // pred_check_branch
      %9 = sbr.rel (0) target = $region5
    $region4: #{tpu_custom_call.1} parent=1 // pred_region
      %11 = vsyncadd [#allocation3], 0
      %s13 = sshll.u32 %s0, 4
      %s14 = int_to_ptr.hbm [resolvable:$true] %s13
      %s15 = sshll.u32 [#allocation2], 4
      %s16 = int_to_ptr.vmem [resolvable:$true] %s15
      %18 = dma.hbm_to_vmem [thread:$0]  %s14, 256, %s16, [#allocation3]
    $region5: #{tpu_custom_call.1} parent=1 // pred_fallthru
      _
    // Predicated region
    $region6: #{tpu_custom_call.1} parent=1 // pred_check
      _
    $region7: #{tpu_custom_call.1} parent=1 // pred_check_branch
      %20 = sbr.rel (0) target = $region9
    $region8: #{tpu_custom_call.1} parent=1 // pred_region
      %22 = dma.done [#allocation3], 256
    $region9: #{tpu_custom_call.1} parent=1 // pred_fallthru
      _
    %v23 = vld [vmem:[#allocation2] sm:$0xff]
    %v24 = vld [vmem:[#allocation2 + $0x8] sm:$0xff]
    %v25 = vxor.u32 %v23, 2147483648
    %v26 = vxor.u32 %v24, 2147483648
    %v27 = vmul.f32 %v25, 1.442695
    %v28 = vpow.pop %v27
    %v29 = vmul.f32 %v26, 1.442695
    %v30 = vpow.pop %v29
    %v31 = vadd.f32 %v28, 1.0
    %v32 = vadd.f32 %v30, 1.0
    %v33 = vrcp.pop %v31
    %v34 = vmul.f32 %v31, %v33
    %v35 = vsub.f32 1.0, %v34
    %v36 = vmul.f32 %v33, %v35
    %v37 = vadd.f32 %v33, %v36
    %vm38 = vweird.f32 %v31
    %vm39 = vweird.f32 %v33
    %vm40 = vmor %vm38, %vm39
    %v41 = vsel %vm40, %v33, %v37
    %v42 = vand.u32 2147483647, %v31
    %vm43 = vcmp.eq.f32.partialorder %v42, 8.507059e+37
    %v44 = vand.u32 %v31, 2147483648
    %v45 = vor.u32 1.1754944e-38, %v44
    %v46 = vsel %vm43, %v45, %v41
    %v47 = vmul.f32 1.0, %v46
    %v48 = vrcp.pop %v32
    %v49 = vmul.f32 %v32, %v48
    %v50 = vsub.f32 1.0, %v49
    %v51 = vmul.f32 %v48, %v50
    %v52 = vadd.f32 %v48, %v51
    %vm53 = vweird.f32 %v32
    %vm54 = vweird.f32 %v48
    %vm55 = vmor %vm53, %vm54
    %v56 = vsel %vm55, %v48, %v52
    %v57 = vand.u32 2147483647, %v32
    %vm58 = vcmp.eq.f32.partialorder %v57, 8.507059e+37
    %v59 = vand.u32 %v32, 2147483648
    %v60 = vor.u32 1.1754944e-38, %v59
    %v61 = vsel %vm58, %v60, %v56
    %v62 = vmul.f32 1.0, %v61
    %v63 = vmul.f32 %v23, %v47
    %v64 = vmul.f32 %v24, %v62
    %65 = vst [vmem:[#allocation5] sm:$0xff] %v63
    %66 = vst [vmem:[#allocation5 + $0x8] sm:$0xff] %v64
    // Predicated region
    $region10: #{tpu_custom_call.1} parent=1 // pred_check
      _
    $region11: #{tpu_custom_call.1} parent=1 // pred_check_branch
      %68 = sbr.rel (0) target = $region13
    $region12: #{tpu_custom_call.1} parent=1 // pred_region
      %70 = vsyncadd [#allocation4], 0
      %s72 = sshll.u32 [#allocation5], 4
      %s73 = int_to_ptr.vmem [resolvable:$true] %s72
      %s74 = sshll.u32 %s1, 4
      %s75 = int_to_ptr.hbm [resolvable:$true] %s74
      %77 = dma.vmem_to_hbm [thread:$0]  %s73, 256, %s75, [#allocation4]
    $region13: #{tpu_custom_call.1} parent=1 // pred_fallthru
      _
    // Predicated region
    $region14: #{tpu_custom_call.1} parent=1 // pred_check
      _
    $region15: #{tpu_custom_call.1} parent=1 // pred_check_branch
      %79 = sbr.rel (0) target = $region17
    $region16: #{tpu_custom_call.1} parent=1 // pred_region
      %81 = dma.done [#allocation4], 256
    $region17: #{tpu_custom_call.1} parent=1 // pred_fallthru
      _
    %82 = vsyncpa [#allocation3], 1
    %83 = vsyncpa [#allocation4], 1

</llo_original>
